<compile_context>
chip_gen: v5e
topology: v5e:2x2
jax: 0.10.0
libtpu: 0.0.40
codegen_flags: <defaults>
</compile_context>

<pallas_src>
import functools

import numpy as np
import jax
import jax.numpy as jnp
from jax.experimental import pallas as pl
from jax.experimental.pallas import tpu as pltpu


# ---------------------------------------------------------------------------
# Pallas kernel: fused MLPBase forward.
#   layer-1 weights concatenated to [F, 2H], layer-2 weights block-diagonal
#   [2H, 2H]  ->  2 MXU matmuls (128 lanes wide for the default H=64) instead
#   of 4.  critic_linear head (N=1) done as a VPU multiply + XLU lane-reduce
#   with a zero-padded weight vector instead of a 1-lane MXU matmul.
# ---------------------------------------------------------------------------
def mlp_policy_kernel(x_ref, w1_ref, b1_ref, w2_ref, b2_ref, vw_ref, vb_ref,
                      actor_ref, value_ref):
    mm_dtype = w1_ref.dtype
    x = x_ref[...].astype(mm_dtype)                           # (TB, F)

    # layer 1: fused actor|critic  -> (TB, 2H) = [ha1 | hc1]
    h1 = jnp.tanh(jnp.dot(x, w1_ref[...],
                          preferred_element_type=jnp.float32) + b1_ref[...])

    # layer 2: block-diagonal fused weight -> (TB, 2H) = [ha | hc]
    h2 = jnp.tanh(jnp.dot(h1.astype(mm_dtype), w2_ref[...],
                          preferred_element_type=jnp.float32) + b2_ref[...])

    half = h2.shape[-1] // 2

    # hidden_actor = first H lanes
    actor_ref[...] = h2[:, :half].astype(actor_ref.dtype)

    # critic_linear head: vw is zero in the actor lanes, so the lane reduce
    # only picks up the critic half.  vb is an SMEM scalar.
    v = jnp.sum(h2 * vw_ref[...], axis=-1, keepdims=True) + vb_ref[0]
    value_ref[...] = v.astype(value_ref.dtype)


def _cdiv(a, b):
    return (a + b - 1) // b


def _round_up(n, m):
    return ((n + m - 1) // m) * m


# ---------------------------------------------------------------------------
# One-time parameter packing (call when params are created / updated, NOT per
# forward step).
# ---------------------------------------------------------------------------
def pack_params(params, matmul_dtype=jnp.bfloat16):
    H = params["aw2"].shape[1]
    H2 = 2 * H
    f32 = jnp.float32

    w1 = jnp.concatenate([params["aw1"], params["cw1"]], axis=1)          # (F, 2H)
    b1 = jnp.concatenate([params["ab1"], params["cb1"]], axis=1)          # (1, 2H)
    w2 = jnp.zeros((H2, H2), f32)
    w2 = w2.at[:H, :H].set(params["aw2"]).at[H:, H:].set(params["cw2"])   # block-diag
    b2 = jnp.concatenate([params["ab2"], params["cb2"]], axis=1)          # (1, 2H)
    vw = jnp.concatenate([jnp.zeros((1, H), f32),
                          params["vw"].reshape(1, H).astype(f32)], axis=1)  # (1, 2H)
    vb = params["vb"].reshape(1).astype(f32)                              # (1,) SMEM

    return {
        "w1": w1.astype(matmul_dtype),
        "b1": b1.astype(f32),
        "w2": w2.astype(matmul_dtype),
        "b2": b2.astype(f32),
        "vw": vw,
        "vb": vb,
    }


# ---------------------------------------------------------------------------
# Forward wrapper (equivalent of Policy.base(inputs, rnn_hxs, masks) for the
# non-recurrent MLPBase): returns (value, hidden_actor, rnn_hxs).
# ---------------------------------------------------------------------------
def policy_base_forward(x, packed, rnn_hxs, block_batch=4096):
    B, F = x.shape
    H2 = packed["w1"].shape[1]
    H = H2 // 2
    assert packed["w1"].shape[0] == F, "obs dim mismatch with packed params"

    # Batch tile: multiple of 8 sublanes, capped by block_batch, and chosen so
    # that the grid has >= 2 tiles whenever B >= 16 (lets the 'parallel' axis
    # shard across the two v7x TensorCores; harmless on 1-TC v5e/v6e).
    TB = min(block_batch, max(8, _round_up(_cdiv(B, 2), 8)))
    grid = (_cdiv(B, TB),)     # ragged last block handled by Pallas; no jnp.pad

    def resident(shape):       # weights stay VMEM-resident across batch tiles
        return pl.BlockSpec(shape, lambda i: (0,) * len(shape))

    actor, value = pl.pallas_call(
        mlp_policy_kernel,
        out_shape=(jax.ShapeDtypeStruct((B, H), jnp.float32),
                   jax.ShapeDtypeStruct((B, 1), jnp.float32)),
        grid=grid,
        in_specs=[
            pl.BlockSpec((TB, F), lambda i: (i, 0)),             # activations
            resident(packed["w1"].shape),
            resident(packed["b1"].shape),
            resident(packed["w2"].shape),
            resident(packed["b2"].shape),
            resident(packed["vw"].shape),
            pl.BlockSpec(memory_space=pltpu.MemorySpace.SMEM),   # vb scalar
        ],
        out_specs=(pl.BlockSpec((TB, H), lambda i: (i, 0)),
                   pl.BlockSpec((TB, 1), lambda i: (i, 0))),
        compiler_params=pltpu.CompilerParams(
            dimension_semantics=("parallel",)),                  # megacore on v7x
    )(x, packed["w1"], packed["b1"], packed["w2"], packed["b2"],
      packed["vw"], packed["vb"])

    # non-recurrent base: rnn_hxs is passed through untouched
    return value, actor, rnn_hxs


# ---------------------------------------------------------------------------
# Deterministic parameter init (mirrors nn.init.orthogonal_ w/ gain, bias=0).
# ---------------------------------------------------------------------------
def orthogonal(key, in_dim, out_dim, gain):
    a = jax.random.normal(key, (max(in_dim, out_dim), min(in_dim, out_dim)),
                          dtype=jnp.float32)
    q, r = jnp.linalg.qr(a)
    d = jnp.diagonal(r)
    q = q * jnp.where(d >= 0, 1.0, -1.0)      # sign fix (avoids sign(0)=0)
    if in_dim < out_dim:
        q = q.T
    return gain * q[:in_dim, :out_dim]


def make_params(key, num_inputs, hidden_size):
    ks = jax.random.split(key, 5)
    g = float(np.sqrt(2.0))
    return {
        "aw1": orthogonal(ks[0], num_inputs, hidden_size, g),
        "ab1": jnp.zeros((1, hidden_size), jnp.float32),
        "aw2": orthogonal(ks[1], hidden_size, hidden_size, g),
        "ab2": jnp.zeros((1, hidden_size), jnp.float32),
        "cw1": orthogonal(ks[2], num_inputs, hidden_size, g),
        "cb1": jnp.zeros((1, hidden_size), jnp.float32),
        "cw2": orthogonal(ks[3], hidden_size, hidden_size, g),
        "cb2": jnp.zeros((1, hidden_size), jnp.float32),
        "vw":  orthogonal(ks[4], hidden_size, 1, 1.0),
        "vb":  jnp.zeros((1, 1), jnp.float32),
    }


# TODO(synk): the CNNBase (3-conv Atari trunk), the recurrent GRU branch of
# NNBase._forward_gru, and the dist heads (Categorical/DiagGaussian/Bernoulli)
# are outside the 1-D-obs non-recurrent path implemented here.


if __name__ == "__main__":
    key = jax.random.PRNGKey(0)
    k_param, k_x = jax.random.split(key, 2)

    B, F, H = 24, 32, 64           # batch, obs dim, hidden_size=64 (MLPBase default)
    params = make_params(k_param, F, H)
    packed = pack_params(params)   # one-time packing (not per act()/get_value())

    x = jax.random.normal(k_x, (B, F), dtype=jnp.float32)
    rnn_hxs = jnp.zeros((B, 1), jnp.float32)   # recurrent_hidden_state_size == 1
    masks = jnp.ones((B, 1), jnp.float32)      # unused on the non-recurrent path

    fwd = jax.jit(functools.partial(policy_base_forward, block_batch=4096))
    value, actor_features, rnn_hxs_out = jax.block_until_ready(
        fwd(x, packed, rnn_hxs))

    # --- references --------------------------------------------------------
    f32, bf16 = jnp.float32, jnp.bfloat16

    # mixed-precision reference: same bf16-matmul / f32-accumulate recipe as kernel
    def mlp2(xq, w1, b1, w2, b2):
        h1 = jnp.tanh(jnp.dot(xq.astype(bf16), w1.astype(bf16),
                              preferred_element_type=f32) + b1)
        return jnp.tanh(jnp.dot(h1.astype(bf16), w2.astype(bf16),
                                preferred_element_type=f32) + b2)

    ha_mp = mlp2(x, params["aw1"], params["ab1"], params["aw2"], params["ab2"])
    hc_mp = mlp2(x, params["cw1"], params["cb1"], params["cw2"], params["cb2"])
    v_mp = (jnp.sum(hc_mp * params["vw"].reshape(1, H), axis=-1, keepdims=True)
            + params["vb"].reshape(1, 1))

    # full-f32 PyTorch-semantics reference (loose tolerance: bf16 matmuls)
    ha_f32 = jnp.tanh(jnp.tanh(x @ params["aw1"] + params["ab1"]) @ params["aw2"] + params["ab2"])
    hc_f32 = jnp.tanh(jnp.tanh(x @ params["cw1"] + params["cb1"]) @ params["cw2"] + params["cb2"])
    v_f32 = hc_f32 @ params["vw"] + params["vb"]

    assert value.shape == (B, 1) and actor_features.shape == (B, H)
    assert rnn_hxs_out.shape == rnn_hxs.shape
    np.testing.assert_allclose(np.asarray(actor_features), np.asarray(ha_mp),
                               atol=2e-3, rtol=2e-3)
    np.testing.assert_allclose(np.asarray(value), np.asarray(v_mp),
                               atol=2e-3, rtol=2e-3)
    np.testing.assert_allclose(np.asarray(actor_features), np.asarray(ha_f32),
                               atol=1e-1, rtol=1e-1)
    np.testing.assert_allclose(np.asarray(value), np.asarray(v_f32),
                               atol=1e-1, rtol=1e-1)

    print("KERNEL_OK")
</pallas_src>

<mosaic_0001>
module attributes {stable_mosaic.version = 11 : i64} {
  func.func @mlp_policy_kernel(%arg0: i32, %arg1: memref<16x32xf32, #tpu.memory_space<vmem>>, %arg2: memref<32x128xbf16, #tpu.memory_space<vmem>>, %arg3: memref<1x128xf32, #tpu.memory_space<vmem>>, %arg4: memref<128x128xbf16, #tpu.memory_space<vmem>>, %arg5: memref<1x128xf32, #tpu.memory_space<vmem>>, %arg6: memref<1x128xf32, #tpu.memory_space<vmem>>, %arg7: memref<1xf32, #tpu.memory_space<smem>>, %arg8: memref<16x64xf32, #tpu.memory_space<vmem>>, %arg9: memref<16x1xf32, #tpu.memory_space<vmem>>) attributes {dimension_semantics = [#tpu.dimension_semantics<parallel>], iteration_bounds = array<i64: 2>, scalar_prefetch = 0 : i64, scratch_operands = 0 : i64, tpu.core_type = #tpu.core_type<tc>, window_params = [{transform_indices = @transform_0, window_bounds = array<i64: 16, 32>}, {pipeline_mode = #tpu.pipeline_mode<synchronous>, transform_indices = @transform_1, window_bounds = array<i64: 32, 128>}, {pipeline_mode = #tpu.pipeline_mode<synchronous>, transform_indices = @transform_2, window_bounds = array<i64: 1, 128>}, {pipeline_mode = #tpu.pipeline_mode<synchronous>, transform_indices = @transform_3, window_bounds = array<i64: 128, 128>}, {pipeline_mode = #tpu.pipeline_mode<synchronous>, transform_indices = @transform_4, window_bounds = array<i64: 1, 128>}, {pipeline_mode = #tpu.pipeline_mode<synchronous>, transform_indices = @transform_5, window_bounds = array<i64: 1, 128>}, {transform_indices = @transform_6, window_bounds = array<i64: 1>}, {transform_indices = @transform_7, window_bounds = array<i64: 16, 64>}, {transform_indices = @transform_8, window_bounds = array<i64: 16, 1>}]} {
    %c0 = arith.constant 0 : index
    %c0_0 = arith.constant 0 : index
    %0 = vector.load %arg1[%c0, %c0_0] : memref<16x32xf32, #tpu.memory_space<vmem>>, vector<16x32xf32>
    %1 = arith.truncf %0 : vector<16x32xf32> to vector<16x32xbf16>
    %c0_1 = arith.constant 0 : index
    %c0_2 = arith.constant 0 : index
    %2 = vector.load %arg2[%c0_1, %c0_2] : memref<32x128xbf16, #tpu.memory_space<vmem>>, vector<32x128xbf16>
    %cst = arith.constant dense<0.000000e+00> : vector<16x128xf32>
    %3 = tpu.matmul %1, %2, %cst {dimension_numbers = #tpu.dot_dimension_numbers<[1], [0], [0], [1], [0, 0, 1, 1], [], []>} : vector<16x32xbf16>, vector<32x128xbf16>, vector<16x128xf32> -> vector<16x128xf32>
    %c0_3 = arith.constant 0 : index
    %c0_4 = arith.constant 0 : index
    %4 = vector.load %arg3[%c0_3, %c0_4] : memref<1x128xf32, #tpu.memory_space<vmem>>, vector<1x128xf32>
    %5 = vector.broadcast %4 : vector<1x128xf32> to vector<16x128xf32>
    %6 = arith.addf %3, %5 : vector<16x128xf32>
    %7 = math.tanh %6 : vector<16x128xf32>
    %8 = arith.truncf %7 : vector<16x128xf32> to vector<16x128xbf16>
    %c0_5 = arith.constant 0 : index
    %c0_6 = arith.constant 0 : index
    %9 = vector.load %arg4[%c0_5, %c0_6] : memref<128x128xbf16, #tpu.memory_space<vmem>>, vector<128x128xbf16>
    %cst_7 = arith.constant dense<0.000000e+00> : vector<16x128xf32>
    %10 = tpu.matmul %8, %9, %cst_7 {dimension_numbers = #tpu.dot_dimension_numbers<[1], [0], [0], [1], [0, 0, 1, 1], [], []>} : vector<16x128xbf16>, vector<128x128xbf16>, vector<16x128xf32> -> vector<16x128xf32>
    %c0_8 = arith.constant 0 : index
    %c0_9 = arith.constant 0 : index
    %11 = vector.load %arg5[%c0_8, %c0_9] : memref<1x128xf32, #tpu.memory_space<vmem>>, vector<1x128xf32>
    %12 = vector.broadcast %11 : vector<1x128xf32> to vector<16x128xf32>
    %13 = arith.addf %10, %12 : vector<16x128xf32>
    %14 = math.tanh %13 : vector<16x128xf32>
    %15 = vector.extract_strided_slice %14 {offsets = [0, 0], sizes = [16, 64], strides = [1, 1]} : vector<16x128xf32> to vector<16x64xf32>
    %c0_10 = arith.constant 0 : index
    %c0_11 = arith.constant 0 : index
    %16 = vector.load %arg8[%c0_10, %c0_11] : memref<16x64xf32, #tpu.memory_space<vmem>>, vector<16x64xf32>
    tpu.vector_store %arg8[%c0_10, %c0_11], %15 {strides = array<i32>} : memref<16x64xf32, #tpu.memory_space<vmem>>, vector<16x64xf32>,
    %c0_12 = arith.constant 0 : index
    %c0_13 = arith.constant 0 : index
    %17 = vector.load %arg6[%c0_12, %c0_13] : memref<1x128xf32, #tpu.memory_space<vmem>>, vector<1x128xf32>
    %18 = vector.broadcast %17 : vector<1x128xf32> to vector<16x128xf32>
    %19 = arith.mulf %14, %18 : vector<16x128xf32>
    %cst_14 = arith.constant dense<0.000000e+00> : vector<16xf32>
    %20 = vector.multi_reduction <add>, %19, %cst_14 [1] : vector<16x128xf32> to vector<16xf32>
    %21 = vector.shape_cast %20 : vector<16xf32> to vector<16x1xf32>
    %c0_15 = arith.constant 0 : index
    %22 = memref.load %arg7[%c0_15] : memref<1xf32, #tpu.memory_space<smem>>
    %23 = vector.broadcast %22 : f32 to vector<16x1xf32>
    %24 = arith.addf %21, %23 : vector<16x1xf32>
    %c0_16 = arith.constant 0 : index
    %c0_17 = arith.constant 0 : index
    %25 = vector.load %arg9[%c0_16, %c0_17] : memref<16x1xf32, #tpu.memory_space<vmem>>, vector<16x1xf32>
    tpu.vector_store %arg9[%c0_16, %c0_17], %24 {strides = array<i32>} : memref<16x1xf32, #tpu.memory_space<vmem>>, vector<16x1xf32>,
    return
  }
  func.func @transform_0(%arg0: i32) -> (i32, i32) {
    %c0_i32 = arith.constant 0 : i32
    %c0_i32_0 = arith.constant 0 : i32
    return %arg0, %c0_i32 : i32, i32
  }
  func.func @transform_1(%arg0: i32) -> (i32, i32) {
    %c0_i32 = arith.constant 0 : i32
    %c0_i32_0 = arith.constant 0 : i32
    %c0_i32_1 = arith.constant 0 : i32
    return %c0_i32, %c0_i32_0 : i32, i32
  }
  func.func @transform_2(%arg0: i32) -> (i32, i32) {
    %c0_i32 = arith.constant 0 : i32
    %c0_i32_0 = arith.constant 0 : i32
    %c0_i32_1 = arith.constant 0 : i32
    return %c0_i32, %c0_i32_0 : i32, i32
  }
  func.func @transform_3(%arg0: i32) -> (i32, i32) {
    %c0_i32 = arith.constant 0 : i32
    %c0_i32_0 = arith.constant 0 : i32
    %c0_i32_1 = arith.constant 0 : i32
    return %c0_i32, %c0_i32_0 : i32, i32
  }
  func.func @transform_4(%arg0: i32) -> (i32, i32) {
    %c0_i32 = arith.constant 0 : i32
    %c0_i32_0 = arith.constant 0 : i32
    %c0_i32_1 = arith.constant 0 : i32
    return %c0_i32, %c0_i32_0 : i32, i32
  }
  func.func @transform_5(%arg0: i32) -> (i32, i32) {
    %c0_i32 = arith.constant 0 : i32
    %c0_i32_0 = arith.constant 0 : i32
    %c0_i32_1 = arith.constant 0 : i32
    return %c0_i32, %c0_i32_0 : i32, i32
  }
  func.func @transform_6(%arg0: i32) -> i32 {
    %c0_i32 = arith.constant 0 : i32
    %c0_i32_0 = arith.constant 0 : i32
    return %c0_i32 : i32
  }
  func.func @transform_7(%arg0: i32) -> (i32, i32) {
    %c0_i32 = arith.constant 0 : i32
    %c0_i32_0 = arith.constant 0 : i32
    return %arg0, %c0_i32 : i32, i32
  }
  func.func @transform_8(%arg0: i32) -> (i32, i32) {
    %c0_i32 = arith.constant 0 : i32
    %c0_i32_0 = arith.constant 0 : i32
    return %arg0, %c0_i32 : i32, i32
  }
}

</mosaic_0001>

<llo_original>
// kernel: policy_base_forward.1
$region0: #{policy_base_forward.1}
  #allocation0 [shape = 'u32[]', space=smem, size = 0x4, offset = 0x4, fixed_abs, tag = 'smem constant byte address 0x4 - core index']
  #allocation1 [shape = 'u32[72,128]{1,0:T(1,128)}', space=vmem, size = 0x9000, scoped, tag = 'internal scratch']
  #allocation2 [shape = 'f32[1]{0:T(128)S(6)}', space=smem, size = 0x200, scoped, tag = 'scoped memory for policy_base_forward.1']
  %s0 = inlined_call_operand.hbm [shape: f32[24,32], index: 0, kind: input, shape index: {}]
  %s1 = inlined_call_operand.hbm [shape: bf16[32,128], index: 1, kind: input, shape index: {}]
  %s2 = inlined_call_operand.vmem [shape: f32[1,128], index: 2, kind: input, shape index: {}]
  %s3 = inlined_call_operand.hbm [shape: bf16[128,128], index: 3, kind: input, shape index: {}]
  %s4 = inlined_call_operand.vmem [shape: f32[1,128], index: 4, kind: input, shape index: {}]
  %s5 = inlined_call_operand.vmem [shape: f32[1,128], index: 5, kind: input, shape index: {}]
  %s6 = inlined_call_operand.<no memory space> [shape: f32[1], index: 6, kind: input, shape index: {}]
  %s7 = inlined_call_operand.hbm [shape: f32[24,64], index: 7, kind: output, shape index: {0}]
  %s8 = inlined_call_operand.vmem [shape: f32[24,1], index: 8, kind: output, shape index: {1}]
  %9 = xla_tuple %s7, %s8
  %s10 = sld [smem:[#allocation0]]
  $region129: #{policy_base_forward.1} parent=0
    _
  %s12 = ssub.s32 1, %s10
  %s13 = scalar_select 0, %s12, %s10
  %14 = sst [smem:[#allocation2]] %s6
  $region1: #{policy_base_forward.1} parent=0
    #allocation3 [shape = 'u8[16384]{0}', space=vmem, size = 0x4000, scoped, tag = 'input window, operand 0']
    #allocation4 [shape = 's32[2]{0}', space=sflag, size = 0x8, scoped, tag = 'scoped memory for policy_base_forward.1']
    #allocation5 [shape = 's32[2]{0}', space=sflag, size = 0x8, scoped, tag = 'scoped memory for policy_base_forward.1']
    #allocation6 [shape = 'u8[8192]{0}', space=vmem, size = 0x2000, scoped, tag = 'input window, operand 1, single buffered']
    #allocation7 [shape = 's32[1]{0}', space=sflag, size = 0x4, scoped, tag = 'scoped memory for policy_base_forward.1']
    #allocation8 [shape = 'u8[32768]{0}', space=vmem, size = 0x8000, scoped, tag = 'input window, operand 3, single buffered']
    #allocation9 [shape = 'u8[16384]{0}', space=vmem, size = 0x4000, scoped, tag = 'output window, operand 0']
    #allocation10 [shape = 'u8[16384]{0}', space=vmem, size = 0x4000, scoped, tag = 'output window, operand 1']
    %15 = vsyncpa [#allocation4], 0
    %s16 = scalar_lea.sflag [#allocation4], 1
    %17 = vsyncpa %s16, 0
    %18 = vsyncpa [#allocation7], 0
    %19 = vsyncpa [#allocation5], 0
    %s20 = scalar_lea.sflag [#allocation5], 1
    %21 = vsyncpa %s20, 0
    loop: start=0, step=1, limit=4
    $region2: #{policy_base_forward.1} parent=1 // loop_pre_header
      _
    $region3: #{policy_base_forward.1} parent=1 // loop_header
      %s23 = sphi 0, %s27
      %p24 = scmp.ge.s32.totalorder %s23, 4
      %s33 = sphi 0, %s35
      %s36 = sphi 0, %s33
      %s37 = sphi 0, %s36
      %s53 = sphi 0, %s37
      %s57 = sphi 0, %s57
      %s59 = sphi 0, %s57
      %s60 = sphi 0, %s59
      %s74 = sphi 0, %s60
      %s78 = sphi 0, %s78
      %s80 = sphi 0, %s78
      %s81 = sphi 0, %s80
      %s95 = sphi 0, %s81
      %s99 = sphi 0, %s99
      %s101 = sphi 0, %s99
      %s102 = sphi 0, %s101
      %s116 = sphi 0, %s102
      %s120 = sphi 0, %s120
      %s122 = sphi 0, %s120
      %s123 = sphi 0, %s122
      %s137 = sphi 0, %s123
      %s141 = sphi 0, %s141
      %s143 = sphi 0, %s141
      %s144 = sphi 0, %s143
      %s158 = sphi 0, %s144
      %s162 = sphi 0, %s162
      %s164 = sphi 0, %s162
      %s165 = sphi 0, %s164
      %s179 = sphi 0, %s165
      %s185 = sphi 0, %s187
      %s188 = sphi 0, %s185
      %s189 = sphi 0, %s188
      %s205 = sphi 0, %s189
      %s211 = sphi 0, %s213
      %s214 = sphi 0, %s211
      %s215 = sphi 0, %s214
      %s231 = sphi 0, %s215
    $region4: #{policy_base_forward.1} parent=1 // loop_header_branch
      %26 = sbr.rel (%p24) target = $region8
    $region5: #{policy_base_forward.1} parent=1 // loop_body
      %s28 = ssub.s32 %s23, 1
      %s29 = ssub.s32 %s23, 2
      %s30 = sadd.s32 %s23, 1
      %s31 = ssub.s32 %s23, %s30
      %p32 = scmp.eq.s32.totalorder %s31, 0
      %s34 = sadd.s32 %s33, 1
      %s35 = scalar_select %p32, %s33, %s34
      %p38 = pneg %p32
      %p39 = scmp.eq.s32.totalorder %s23, 1
      %p40 = por %p38, %p39
      %p41 = scmp.ne.s32.totalorder %s33, %s36
      %p42 = scmp.eq.s32.totalorder %s23, 0
      %p43 = por %p41, %p42
      %p44 = scmp.ne.s32.totalorder %s33, %s36
      %p45 = scmp.eq.s32.totalorder %s28, 1
      %p46 = por %p44, %p45
      %p47 = scmp.ne.s32.totalorder %s36, %s37
      %p48 = scmp.eq.s32.totalorder %s28, 0
      %p49 = por %p47, %p48
      %p50 = scmp.ne.s32.totalorder %s36, %s37
      %p51 = scmp.eq.s32.totalorder %s29, 1
      %p52 = por %p50, %p51
      %p54 = scmp.ne.s32.totalorder %s37, %s53
      %p55 = scmp.eq.s32.totalorder %s29, 0
      %p56 = por %p54, %p55
      %s58 = sadd.s32 %s57, 1
      %p61 = scmp.eq.s32.totalorder %s23, 1
      %p62 = scmp.ne.s32.totalorder %s57, %s59
      %p63 = scmp.eq.s32.totalorder %s23, 0
      %p64 = por %p62, %p63
      %p65 = scmp.ne.s32.totalorder %s57, %s59
      %p66 = scmp.eq.s32.totalorder %s28, 1
      %p67 = por %p65, %p66
      %p68 = scmp.ne.s32.totalorder %s59, %s60
      %p69 = scmp.eq.s32.totalorder %s28, 0
      %p70 = por %p68, %p69
      %p71 = scmp.ne.s32.totalorder %s59, %s60
      %p72 = scmp.eq.s32.totalorder %s29, 1
      %p73 = por %p71, %p72
      %p75 = scmp.ne.s32.totalorder %s60, %s74
      %p76 = scmp.eq.s32.totalorder %s29, 0
      %p77 = por %p75, %p76
      %s79 = sadd.s32 %s78, 1
      %p82 = scmp.eq.s32.totalorder %s23, 1
      %p83 = scmp.ne.s32.totalorder %s78, %s80
      %p84 = scmp.eq.s32.totalorder %s23, 0
      %p85 = por %p83, %p84
      %p86 = scmp.ne.s32.totalorder %s78, %s80
      %p87 = scmp.eq.s32.totalorder %s28, 1
      %p88 = por %p86, %p87
      %p89 = scmp.ne.s32.totalorder %s80, %s81
      %p90 = scmp.eq.s32.totalorder %s28, 0
      %p91 = por %p89, %p90
      %p92 = scmp.ne.s32.totalorder %s80, %s81
      %p93 = scmp.eq.s32.totalorder %s29, 1
      %p94 = por %p92, %p93
      %p96 = scmp.ne.s32.totalorder %s81, %s95
      %p97 = scmp.eq.s32.totalorder %s29, 0
      %p98 = por %p96, %p97
      %s100 = sadd.s32 %s99, 1
      %p103 = scmp.eq.s32.totalorder %s23, 1
      %p104 = scmp.ne.s32.totalorder %s99, %s101
      %p105 = scmp.eq.s32.totalorder %s23, 0
      %p106 = por %p104, %p105
      %p107 = scmp.ne.s32.totalorder %s99, %s101
      %p108 = scmp.eq.s32.totalorder %s28, 1
      %p109 = por %p107, %p108
      %p110 = scmp.ne.s32.totalorder %s101, %s102
      %p111 = scmp.eq.s32.totalorder %s28, 0
      %p112 = por %p110, %p111
      %p113 = scmp.ne.s32.totalorder %s101, %s102
      %p114 = scmp.eq.s32.totalorder %s29, 1
      %p115 = por %p113, %p114
      %p117 = scmp.ne.s32.totalorder %s102, %s116
      %p118 = scmp.eq.s32.totalorder %s29, 0
      %p119 = por %p117, %p118
      %s121 = sadd.s32 %s120, 1
      %p124 = scmp.eq.s32.totalorder %s23, 1
      %p125 = scmp.ne.s32.totalorder %s120, %s122
      %p126 = scmp.eq.s32.totalorder %s23, 0
      %p127 = por %p125, %p126
      %p128 = scmp.ne.s32.totalorder %s120, %s122
      %p129 = scmp.eq.s32.totalorder %s28, 1
      %p130 = por %p128, %p129
      %p131 = scmp.ne.s32.totalorder %s122, %s123
      %p132 = scmp.eq.s32.totalorder %s28, 0
      %p133 = por %p131, %p132
      %p134 = scmp.ne.s32.totalorder %s122, %s123
      %p135 = scmp.eq.s32.totalorder %s29, 1
      %p136 = por %p134, %p135
      %p138 = scmp.ne.s32.totalorder %s123, %s137
      %p139 = scmp.eq.s32.totalorder %s29, 0
      %p140 = por %p138, %p139
      %s142 = sadd.s32 %s141, 1
      %p145 = scmp.eq.s32.totalorder %s23, 1
      %p146 = scmp.ne.s32.totalorder %s141, %s143
      %p147 = scmp.eq.s32.totalorder %s23, 0
      %p148 = por %p146, %p147
      %p149 = scmp.ne.s32.totalorder %s141, %s143
      %p150 = scmp.eq.s32.totalorder %s28, 1
      %p151 = por %p149, %p150
      %p152 = scmp.ne.s32.totalorder %s143, %s144
      %p153 = scmp.eq.s32.totalorder %s28, 0
      %p154 = por %p152, %p153
      %p155 = scmp.ne.s32.totalorder %s143, %s144
      %p156 = scmp.eq.s32.totalorder %s29, 1
      %p157 = por %p155, %p156
      %p159 = scmp.ne.s32.totalorder %s144, %s158
      %p160 = scmp.eq.s32.totalorder %s29, 0
      %p161 = por %p159, %p160
      %s163 = sadd.s32 %s162, 1
      %p166 = scmp.eq.s32.totalorder %s23, 1
      %p167 = scmp.ne.s32.totalorder %s162, %s164
      %p168 = scmp.eq.s32.totalorder %s23, 0
      %p169 = por %p167, %p168
      %p170 = scmp.ne.s32.totalorder %s162, %s164
      %p171 = scmp.eq.s32.totalorder %s28, 1
      %p172 = por %p170, %p171
      %p173 = scmp.ne.s32.totalorder %s164, %s165
      %p174 = scmp.eq.s32.totalorder %s28, 0
      %p175 = por %p173, %p174
      %p176 = scmp.ne.s32.totalorder %s164, %s165
      %p177 = scmp.eq.s32.totalorder %s29, 1
      %p178 = por %p176, %p177
      %p180 = scmp.ne.s32.totalorder %s165, %s179
      %p181 = scmp.eq.s32.totalorder %s29, 0
      %p182 = por %p180, %p181
      %s183 = ssub.s32 %s23, %s30
      %p184 = scmp.eq.s32.totalorder %s183, 0
      %s186 = sadd.s32 %s185, 1
      %s187 = scalar_select %p184, %s185, %s186
      %p190 = pneg %p184
      %p191 = scmp.eq.s32.totalorder %s23, 1
      %p192 = por %p190, %p191
      %p193 = scmp.ne.s32.totalorder %s185, %s188
      %p194 = scmp.eq.s32.totalorder %s23, 0
      %p195 = por %p193, %p194
      %p196 = scmp.ne.s32.totalorder %s185, %s188
      %p197 = scmp.eq.s32.totalorder %s28, 1
      %p198 = por %p196, %p197
      %p199 = scmp.ne.s32.totalorder %s188, %s189
      %p200 = scmp.eq.s32.totalorder %s28, 0
      %p201 = por %p199, %p200
      %p202 = scmp.ne.s32.totalorder %s188, %s189
      %p203 = scmp.eq.s32.totalorder %s29, 1
      %p204 = por %p202, %p203
      %p206 = scmp.ne.s32.totalorder %s189, %s205
      %p207 = scmp.eq.s32.totalorder %s29, 0
      %p208 = por %p206, %p207
      %s209 = ssub.s32 %s23, %s30
      %p210 = scmp.eq.s32.totalorder %s209, 0
      %s212 = sadd.s32 %s211, 1
      %s213 = scalar_select %p210, %s211, %s212
      %p216 = pneg %p210
      %p217 = scmp.eq.s32.totalorder %s23, 1
      %p218 = por %p216, %p217
      %p219 = scmp.ne.s32.totalorder %s211, %s214
      %p220 = scmp.eq.s32.totalorder %s23, 0
      %p221 = por %p219, %p220
      %p222 = scmp.ne.s32.totalorder %s211, %s214
      %p223 = scmp.eq.s32.totalorder %s28, 1
      %p224 = por %p222, %p223
      %p225 = scmp.ne.s32.totalorder %s214, %s215
      %p226 = scmp.eq.s32.totalorder %s28, 0
      %p227 = por %p225, %p226
      %p228 = scmp.ne.s32.totalorder %s214, %s215
      %p229 = scmp.eq.s32.totalorder %s29, 1
      %p230 = por %p228, %p229
      %p232 = scmp.ne.s32.totalorder %s215, %s231
      %p233 = scmp.eq.s32.totalorder %s29, 0
      %p234 = por %p232, %p233
      %p235 = scmp.le.s32.totalorder 1, %s23
      %p236 = scmp.lt.s32.totalorder %s23, 3
      %p237 = pnand %p235, %p236
      %p238 = pneg %p237
      // Predicated region
      $region9: #{policy_base_forward.1} parent=5 // pred_check
        _
      $region10: #{policy_base_forward.1} parent=5 // pred_check_branch
        %240 = sbr.rel (%p237) target = $region12
      $region11: #{policy_base_forward.1} parent=5 // pred_region
        %s241 = ssub.s32 %s23, 1
        // Predicated region
        $region13: #{policy_base_forward.1} parent=11 // pred_check
          %p242 = pneg %p70
        $region14: #{policy_base_forward.1} parent=11 // pred_check_branch
          %244 = sbr.rel (%p242) target = $region16
        $region15: #{policy_base_forward.1} parent=11 // pred_region
          %246 = vsyncadd [#allocation7], 0
          %s247 = sshll.u32 %s1, 4
          %s248 = int_to_ptr.hbm [resolvable:$true] %s247
          %s249 = sshll.u32 [#allocation6], 4
          %s250 = int_to_ptr.vmem [resolvable:$true] %s249
          %255 = dma.hbm_to_vmem [thread:$0]  %s248, 256, %s250, [#allocation7], 64, 64, 4
        $region16: #{policy_base_forward.1} parent=11 // pred_fallthru
          _
        // Predicated region
        $region17: #{policy_base_forward.1} parent=11 // pred_check
          %p256 = pneg %p91
        $region18: #{policy_base_forward.1} parent=11 // pred_check_branch
          %258 = sbr.rel (%p256) target = $region20
        $region19: #{policy_base_forward.1} parent=11 // pred_region
          _
        $region20: #{policy_base_forward.1} parent=11 // pred_fallthru
          _
        // Predicated region
        $region21: #{policy_base_forward.1} parent=11 // pred_check
          %p259 = pneg %p112
        $region22: #{policy_base_forward.1} parent=11 // pred_check_branch
          %261 = sbr.rel (%p259) target = $region24
        $region23: #{policy_base_forward.1} parent=11 // pred_region
          %263 = vsyncadd [#allocation7], 0
          %s264 = sshll.u32 %s3, 4
          %s265 = int_to_ptr.hbm [resolvable:$true] %s264
          %s266 = sshll.u32 [#allocation8], 4
          %s267 = int_to_ptr.vmem [resolvable:$true] %s266
          %272 = dma.hbm_to_vmem [thread:$0]  %s265, 1024, %s267, [#allocation7], 64, 64, 4
        $region24: #{policy_base_forward.1} parent=11 // pred_fallthru
          _
        // Predicated region
        $region25: #{policy_base_forward.1} parent=11 // pred_check
          %p273 = pneg %p133
        $region26: #{policy_base_forward.1} parent=11 // pred_check_branch
          %275 = sbr.rel (%p273) target = $region28
        $region27: #{policy_base_forward.1} parent=11 // pred_region
          _
        $region28: #{policy_base_forward.1} parent=11 // pred_fallthru
          _
        // Predicated region
        $region29: #{policy_base_forward.1} parent=11 // pred_check
          %p276 = pneg %p154
        $region30: #{policy_base_forward.1} parent=11 // pred_check_branch
          %278 = sbr.rel (%p276) target = $region32
        $region31: #{policy_base_forward.1} parent=11 // pred_region
          _
        $region32: #{policy_base_forward.1} parent=11 // pred_fallthru
          _
        // Predicated region
        $region33: #{policy_base_forward.1} parent=11 // pred_check
          %p279 = pneg %p175
        $region34: #{policy_base_forward.1} parent=11 // pred_check_branch
          %281 = sbr.rel (%p279) target = $region36
        $region35: #{policy_base_forward.1} parent=11 // pred_region
          _
        $region36: #{policy_base_forward.1} parent=11 // pred_fallthru
          _
      $region12: #{policy_base_forward.1} parent=5 // pred_fallthru
        _
      %p282 = scmp.lt.s32.totalorder %s23, 2
      // Predicated region
      $region37: #{policy_base_forward.1} parent=5 // pred_check
        %p283 = pneg %p282
      $region38: #{policy_base_forward.1} parent=5 // pred_check_branch
        %285 = sbr.rel (%p283) target = $region40
      $region39: #{policy_base_forward.1} parent=5 // pred_region
        // Predicated region
        $region41: #{policy_base_forward.1} parent=39 // pred_check
          %p286 = pneg %p43
        $region42: #{policy_base_forward.1} parent=39 // pred_check_branch
          %288 = sbr.rel (%p286) target = $region44
        $region43: #{policy_base_forward.1} parent=39 // pred_region
          %s289 = sand.u32 %s33, 1
          %s290 = scalar_lea.sflag [#allocation4], %s289
          %s291 = sand.u32 %s33, 1
          %s292 = smul.addr %s291, 16
          %s293 = scalar_lea.vmem [#allocation3], %s292
          %s294 = smul.u32 2, %s23
          %s295 = ssub.s32 3, %s294
          %p296 = scmp.lt.s32.totalorder %s295, 2
          %s297 = scalar_select %p296, %s295, 2
          %s298 = smul.u32 8, %s297
          %s299 = ssub.s32 16, %s298
          %s300 = sshll.u32 %s299, 4
          %301 = vsyncadd %s290, %s300
          %p302 = scmp.ne.s32.totalorder 0, %s298
          %s303 = smul.addr %s294, 8
          %s304 = scalar_lea.hbm %s0, %s303
          %s305 = smul.u32 8, %s297
          %s306 = sshll.u32 %s304, 4
          %s307 = int_to_ptr.hbm [resolvable:$true] %s306
          %s308 = sshll.u32 %s293, 4
          %s309 = int_to_ptr.vmem [resolvable:$true] %s308
          %s310 = sshll.u32 %s305, 4
          %314 = dma.hbm_to_vmem [thread:$0]  (%p302), %s307, %s310, %s309, %s290, 128, 128, 8
        $region44: #{policy_base_forward.1} parent=39 // pred_fallthru
          _
      $region40: #{policy_base_forward.1} parent=5 // pred_fallthru
        _
      %p315 = scmp.le.s32.totalorder 1, %s23
      %p316 = scmp.lt.s32.totalorder %s23, 3
      %p317 = pnand %p315, %p316
      %p318 = pneg %p317
      // Predicated region
      $region45: #{policy_base_forward.1} parent=5 // pred_check
        _
      $region46: #{policy_base_forward.1} parent=5 // pred_check_branch
        %320 = sbr.rel (%p317) target = $region48
      $region47: #{policy_base_forward.1} parent=5 // pred_region
        %s321 = ssub.s32 %s23, 1
        %s322 = sand.u32 %s36, 1
        %s323 = scalar_lea.sflag [#allocation4], %s322
        %s324 = sand.u32 %s36, 1
        %s325 = smul.addr %s324, 16
        %s326 = scalar_lea.vmem [#allocation3], %s325
        // Predicated region
        $region49: #{policy_base_forward.1} parent=47 // pred_check
          %p327 = pneg %p49
        $region50: #{policy_base_forward.1} parent=47 // pred_check_branch
          %329 = sbr.rel (%p327) target = $region52
        $region51: #{policy_base_forward.1} parent=47 // pred_region
          %331 = dma.done %s323, 256
        $region52: #{policy_base_forward.1} parent=47 // pred_fallthru
          _
        // Predicated region
        $region53: #{policy_base_forward.1} parent=47 // pred_check
          %p332 = pneg %p70
        $region54: #{policy_base_forward.1} parent=47 // pred_check_branch
          %334 = sbr.rel (%p332) target = $region56
        $region55: #{policy_base_forward.1} parent=47 // pred_region
          %336 = dma.done [#allocation7], 256
        $region56: #{policy_base_forward.1} parent=47 // pred_fallthru
          _
        // Predicated region
        $region57: #{policy_base_forward.1} parent=47 // pred_check
          %p337 = pneg %p112
        $region58: #{policy_base_forward.1} parent=47 // pred_check_branch
          %339 = sbr.rel (%p337) target = $region60
        $region59: #{policy_base_forward.1} parent=47 // pred_region
          %341 = dma.done [#allocation7], 1024
        $region60: #{policy_base_forward.1} parent=47 // pred_fallthru
          _
        %s342 = sand.u32 %s36, 1
        %s343 = scalar_lea.sflag [#allocation4], %s342
        %s344 = sand.u32 %s36, 1
        %s345 = smul.addr %s344, 16
        %s346 = scalar_lea.vmem [#allocation3], %s345
        %p347 = pneg %p49
        %p348 = pneg %p46
        %p349 = pneg %p70
        %p350 = pneg %p67
        %p351 = pneg %p91
        %p352 = pneg %p88
        %p353 = pneg %p112
        %p354 = pneg %p109
        %p355 = pneg %p133
        %p356 = pneg %p130
        %p357 = pneg %p154
        %p358 = pneg %p151
        %p359 = pneg %p175
        %p360 = pneg %p172
        %p361 = pneg %p201
        %p362 = pneg %p198
        %s363 = sand.u32 %s188, 1
        %s364 = scalar_lea.sflag [#allocation5], %s363
        %s365 = sand.u32 %s188, 1
        %s366 = smul.addr %s365, 16
        %s367 = scalar_lea.vmem [#allocation9], %s366
        %p368 = pneg %p227
        %p369 = pneg %p224
        %s370 = sand.u32 %s214, 1
        %s371 = sand.u32 %s214, 1
        %s372 = smul.addr %s371, 16
        %s373 = scalar_lea.vmem [#allocation10], %s372
        %s374 = smul.u32 2, %s28
        %s375 = ssub.s32 3, %s374
        %p376 = scmp.lt.s32.totalorder %s375, 2
        %s377 = scalar_select %p376, %s375, 2
        %s378 = smul.u32 8, %s377
        %s379 = smul.u32 2, %s28
        %s380 = ssub.s32 3, %s379
        %p381 = scmp.lt.s32.totalorder %s380, 2
        %s382 = scalar_select %p381, %s380, 2
        %s383 = smul.u32 8, %s382
        %s384 = smul.u32 2, %s28
        %s385 = ssub.s32 3, %s384
        %p386 = scmp.lt.s32.totalorder %s385, 2
        %s387 = scalar_select %p386, %s385, 2
        %s388 = smul.u32 8, %s387
        %v390 = vld [vmem:[%s326] sm:$0xff]
        %v391 = vld [vmem:[%s326 + $0x8] sm:$0xff]
        %v392 = vpack.c.bf16 %v391, %v390
        %v393 = vld [vmem:[#allocation6] sm:$0xf]
        %v394 = vld [vmem:[#allocation6 + $0x4] sm:$0xf]
        %v395 = vld [vmem:[#allocation6 + $0x8] sm:$0xf]
        %v396 = vld [vmem:[#allocation6 + $0xc] sm:$0xf]
        %v397 = vld [vmem:[%s2] sm:$0x1]
        %v399 = vperm.slane %v397, 0
        %v405 = vunpack.c.l.b16 %v393
        %v406 = vunpack.c.l.b16 %v394
        %v407 = vunpack.c.l.b16 %v395
        %v408 = vunpack.c.l.b16 %v396
        %v409 = vpack.c.b16 %v406, %v405
        %v410 = vpack.c.b16 %v408, %v407
        %vm413 = vcmask 261120
        %v415 = vsel %vm413, %v392, 0
        %417 = vmatpush.bf16.msra.mxu0 0
        %418 = vmatpush.bf16.msra.mxu0 0
        %419 = vmatpush.bf16.msra.mxu0 0
        %420 = vmatpush.bf16.msra.mxu0 0
        %421 = vmatpush.bf16.msra.mxu0 0
        %422 = vmatpush.bf16.msra.mxu0 0
        %423 = vmatpush.bf16.msra.mxu0 %v410
        %424 = vmatpush.bf16.msra.mxu0 %v409
        %425 = vmatmul.bf16.gmra.mxu0 %v415
        %v426 = vpop.f32.mrf.mxu0
        %v427 = vadd.f32 %v399, %v426
        %v428 = vpop.f32.mrf.mxu0
        %v429 = vadd.f32 %v399, %v428
        %430 = vdwg.mxu0
        %v431 = vtanh.pop %v427
        %v432 = vtanh.pop %v429
        %v433 = vpack.c.bf16 %v432, %v431
        %v434 = vld [vmem:[#allocation8] sm:$0xf]
        %v435 = vld [vmem:[#allocation8 + $0x4] sm:$0xf]
        %v436 = vld [vmem:[#allocation8 + $0x8] sm:$0xf]
        %v437 = vld [vmem:[#allocation8 + $0xc] sm:$0xf]
        %v438 = vld [vmem:[#allocation8 + $0x10] sm:$0xf]
        %v439 = vld [vmem:[#allocation8 + $0x14] sm:$0xf]
        %v440 = vld [vmem:[#allocation8 + $0x18] sm:$0xf]
        %v441 = vld [vmem:[#allocation8 + $0x1c] sm:$0xf]
        %v442 = vld [vmem:[#allocation8 + $0x20] sm:$0xf]
        %v443 = vld [vmem:[#allocation8 + $0x24] sm:$0xf]
        %v444 = vld [vmem:[#allocation8 + $0x28] sm:$0xf]
        %v445 = vld [vmem:[#allocation8 + $0x2c] sm:$0xf]
        %v446 = vld [vmem:[#allocation8 + $0x30] sm:$0xf]
        %v447 = vld [vmem:[#allocation8 + $0x34] sm:$0xf]
        %v448 = vld [vmem:[#allocation8 + $0x38] sm:$0xf]
        %v449 = vld [vmem:[#allocation8 + $0x3c] sm:$0xf]
        %v450 = vld [vmem:[%s4] sm:$0x1]
        %v452 = vperm.slane %v450, 0
        %v470 = vunpack.c.l.b16 %v434
        %v471 = vunpack.c.l.b16 %v435
        %v472 = vunpack.c.l.b16 %v436
        %v473 = vunpack.c.l.b16 %v437
        %v474 = vunpack.c.l.b16 %v438
        %v475 = vunpack.c.l.b16 %v439
        %v476 = vunpack.c.l.b16 %v440
        %v477 = vunpack.c.l.b16 %v441
        %v478 = vunpack.c.l.b16 %v442
        %v479 = vunpack.c.l.b16 %v443
        %v480 = vunpack.c.l.b16 %v444
        %v481 = vunpack.c.l.b16 %v445
        %v482 = vunpack.c.l.b16 %v446
        %v483 = vunpack.c.l.b16 %v447
        %v484 = vunpack.c.l.b16 %v448
        %v485 = vunpack.c.l.b16 %v449
        %v486 = vpack.c.b16 %v471, %v470
        %v487 = vpack.c.b16 %v473, %v472
        %v488 = vpack.c.b16 %v475, %v474
        %v489 = vpack.c.b16 %v477, %v476
        %v490 = vpack.c.b16 %v479, %v478
        %v491 = vpack.c.b16 %v481, %v480
        %v492 = vpack.c.b16 %v483, %v482
        %v493 = vpack.c.b16 %v485, %v484
        %502 = vmatpush.bf16.msra.mxu0 %v493
        %503 = vmatpush.bf16.msra.mxu0 %v492
        %504 = vmatpush.bf16.msra.mxu0 %v491
        %505 = vmatpush.bf16.msra.mxu0 %v490
        %506 = vmatpush.bf16.msra.mxu0 %v489
        %507 = vmatpush.bf16.msra.mxu0 %v488
        %508 = vmatpush.bf16.msra.mxu0 %v487
        %509 = vmatpush.bf16.msra.mxu0 %v486
        %510 = vmatmul.bf16.gmra.mxu0 %v433
        %v511 = vpop.f32.mrf.mxu0
        %v512 = vadd.f32 %v452, %v511
        %v513 = vpop.f32.mrf.mxu0
        %v514 = vadd.f32 %v452, %v513
        %515 = vdwg.mxu0
        %v516 = vtanh.pop %v512
        %v517 = vtanh.pop %v514
        %vm518 = vcmask 523264
        %519 = vst.msk [vmem:[%s367] sm:$0xff] %vm518, %v516
        %520 = vst.msk [vmem:[%s367 + $0x8] sm:$0xff] %vm518, %v517
        %v521 = vld [vmem:[%s5] sm:$0x1]
        %v523 = vperm.slane %v521, 0
        %v525 = vmul.f32 %v516, %v523
        %v526 = vmul.f32 %v517, %v523
        %527 = vadd.xlane.f32.xlu0 %v525
        %v528 = vpop.xlane.xlu0 %527
        %529 = vadd.xlane.f32.xlu0 %v526
        %v530 = vpop.xlane.xlu0 %529
        %s531 = sld [smem:[#allocation2]]
        %v532 = vstv %s531
        %v533 = vadd.f32 %v528, %v532
        %v534 = vadd.f32 %v530, %v532
        %vm535 = vcmask 7168
        %536 = vst.msk [vmem:[%s373] sm:$0xff] %vm535, %v533
        %537 = vst.msk [vmem:[%s373 + $0x8] sm:$0xff] %vm535, %v534
        %s538 = sand.u32 %s188, 1
        %s539 = scalar_lea.sflag [#allocation5], %s538
        %s540 = sand.u32 %s188, 1
        %s541 = smul.addr %s540, 16
        %s542 = scalar_lea.vmem [#allocation9], %s541
        %s543 = sand.u32 %s214, 1
        %s544 = sand.u32 %s214, 1
        %s545 = smul.addr %s544, 16
        %s546 = scalar_lea.vmem [#allocation10], %s545
        // Predicated region
        $region61: #{policy_base_forward.1} parent=47 // pred_check
          %p547 = pneg %p198
        $region62: #{policy_base_forward.1} parent=47 // pred_check_branch
          %549 = sbr.rel (%p547) target = $region64
        $region63: #{policy_base_forward.1} parent=47 // pred_region
          %s550 = smul.u32 2, %s28
          %s551 = ssub.s32 3, %s550
          %p552 = scmp.lt.s32.totalorder %s551, 2
          %s553 = scalar_select %p552, %s551, 2
          %s554 = smul.u32 8, %s553
          %s555 = ssub.s32 16, %s554
          %s556 = sshll.u32 %s555, 4
          %557 = vsyncadd %s539, %s556
          %p558 = scmp.ne.s32.totalorder 0, %s554
          %s559 = smul.addr %s550, 8
          %s560 = scalar_lea.hbm %s7, %s559
          %s561 = smul.u32 8, %s553
          %s562 = sshll.u32 %s542, 4
          %s563 = int_to_ptr.vmem [resolvable:$true] %s562
          %s564 = sshll.u32 %s560, 4
          %s565 = int_to_ptr.hbm [resolvable:$true] %s564
          %s566 = sshll.u32 %s561, 4
          %570 = dma.vmem_to_hbm [thread:$0]  (%p558), %s563, %s566, %s565, %s539, 128, 128, 8
        $region64: #{policy_base_forward.1} parent=47 // pred_fallthru
          _
        // Predicated region
        $region65: #{policy_base_forward.1} parent=47 // pred_check
          %p571 = pneg %p224
        $region66: #{policy_base_forward.1} parent=47 // pred_check_branch
          %573 = sbr.rel (%p571) target = $region68
        $region67: #{policy_base_forward.1} parent=47 // pred_region
          %s574 = smul.u32 2, %s28
          %s575 = ssub.s32 3, %s574
          %p576 = scmp.lt.s32.totalorder %s575, 2
          %s577 = scalar_select %p576, %s575, 2
          %s578 = smul.u32 8, %s577
          %p579 = scmp.ne.s32.totalorder 0, %s578
          %s580 = smul.addr %s574, 8
          %s581 = scalar_lea.vmem %s8, %s580
          // Predicated region
          $region69: #{policy_base_forward.1} parent=67 // pred_check
            %p582 = pneg %p579
          $region70: #{policy_base_forward.1} parent=67 // pred_check_branch
            %584 = sbr.rel (%p582) target = $region72
          $region71: #{policy_base_forward.1} parent=67 // pred_region
            // Predicated region
            $region73: #{policy_base_forward.1} parent=71 // pred_check
              _
            $region74: #{policy_base_forward.1} parent=71 // pred_check_branch
              %586 = sbr.rel (0) target = $region76
            $region75: #{policy_base_forward.1} parent=71 // pred_region
              // Predicated region
              $region95: #{policy_base_forward.1} parent=75 // pred_check
                _
              $region96: #{policy_base_forward.1} parent=75 // pred_check_branch
                %638 = sbr.rel (0) target = $region98
              $region97: #{policy_base_forward.1} parent=75 // pred_region
                %s639 = sshrl.u32 %s577, 1
                // While loop
                $region99: #{policy_base_forward.1} parent=97 // loop_pre_header
                  _
                $region100: #{policy_base_forward.1} parent=97 // loop_header
                  %s641 = sphi 0, %s643
                  %p642 = scmp.ge.s32.totalorder %s641, %s639
                  %s646 = sphi 0, %s655
                  %s647 = sphi %s546, %s658
                  %s648 = sphi %s581, %s659
                $region101: #{policy_base_forward.1} parent=97 // loop_header_branch
                  %645 = sbr.rel (%p642) target = $region105
                $region102: #{policy_base_forward.1} parent=97 // loop_body
                  %v649 = vld [vmem:[%s647] sm:$0xff]
                  %650 = vst [vmem:[%s648] sm:$0xff] %v649
                  %v651 = vld [vmem:[%s647 + $0x8] sm:$0xff]
                  %652 = vst [vmem:[%s648 + $0x8] sm:$0xff] %v651
                  %s653 = sadd.s32 1, %s646
                  %p654 = scmp.ge.s32.totalorder %s653, %s639
                  %s655 = scalar_select %p654, 0, %s653
                  %s656 = smul.u32 %s655, 16
                  %s657 = smul.u32 %s655, 16
                  %s658 = scalar_lea.vmem %s546, %s656 [#allocation10]
                  %s659 = scalar_lea.vmem %s581, %s657
                $region103: #{policy_base_forward.1} parent=97 // loop_footer
                  %s643 = sadd.s32 %s641, 1
                $region104: #{policy_base_forward.1} parent=97 // loop_footer_branch
                  %640 = sbr.rel target = $region100
                $region105: #{policy_base_forward.1} parent=97 // loop_exit
                  _
                %s660 = sshrl.u32 %s577, 1
                %s661 = sand.u32 %s577, 1
                %s662 = smul.u32 %s660, 2
                %s663 = smul.u32 8, %s662
                %s664 = scalar_lea.vmem %s546, %s663 [#allocation10]
                %s665 = smul.u32 8, %s662
                %s666 = scalar_lea.vmem %s581, %s665
                // While loop
                $region106: #{policy_base_forward.1} parent=97 // loop_pre_header
                  _
                $region107: #{policy_base_forward.1} parent=97 // loop_header
                  %s668 = sphi 0, %s670
                  %p669 = scmp.ge.s32.totalorder %s668, %s661
                  %s673 = sphi 0, %s680
                  %s674 = sphi %s664, %s683
                  %s675 = sphi %s666, %s684
                $region108: #{policy_base_forward.1} parent=97 // loop_header_branch
                  %672 = sbr.rel (%p669) target = $region112
                $region109: #{policy_base_forward.1} parent=97 // loop_body
                  %v676 = vld [vmem:[%s674] sm:$0xff]
                  %677 = vst [vmem:[%s675] sm:$0xff] %v676
                  %s678 = sadd.s32 1, %s673
                  %p679 = scmp.ge.s32.totalorder %s678, %s661
                  %s680 = scalar_select %p679, 0, %s678
                  %s681 = smul.u32 %s680, 8
                  %s682 = smul.u32 %s680, 8
                  %s683 = scalar_lea.vmem %s664, %s681 [#allocation10]
                  %s684 = scalar_lea.vmem %s666, %s682
                $region110: #{policy_base_forward.1} parent=97 // loop_footer
                  %s670 = sadd.s32 %s668, 1
                $region111: #{policy_base_forward.1} parent=97 // loop_footer_branch
                  %667 = sbr.rel target = $region107
                $region112: #{policy_base_forward.1} parent=97 // loop_exit
                  _
              $region98: #{policy_base_forward.1} parent=75 // pred_fallthru
                _
              // Predicated region
              $region113: #{policy_base_forward.1} parent=75 // pred_check
                _
              $region114: #{policy_base_forward.1} parent=75 // pred_check_branch
                %686 = sbr.rel target = $region116
              $region115: #{policy_base_forward.1} parent=75 // pred_region
                _
              $region116: #{policy_base_forward.1} parent=75 // pred_fallthru
                _
            $region76: #{policy_base_forward.1} parent=71 // pred_fallthru
              _
            // Predicated region
            $region77: #{policy_base_forward.1} parent=71 // pred_check
              _
            $region78: #{policy_base_forward.1} parent=71 // pred_check_branch
              %588 = sbr.rel target = $region80
            $region79: #{policy_base_forward.1} parent=71 // pred_region
              %s590 = ssub.s32 256, 1
              %s591 = sshrl.u32 %s577, 1
              // While loop
              $region81: #{policy_base_forward.1} parent=79 // loop_pre_header
                _
              $region82: #{policy_base_forward.1} parent=79 // loop_header
                %s593 = sphi 0, %s595
                %p594 = scmp.ge.s32.totalorder %s593, %s591
                %s598 = sphi 0, %s607
                %s599 = sphi %s546, %s610
                %s600 = sphi %s581, %s611
              $region83: #{policy_base_forward.1} parent=79 // loop_header_branch
                %597 = sbr.rel (%p594) target = $region87
              $region84: #{policy_base_forward.1} parent=79 // loop_body
                %v601 = vld [vmem:[%s599] sm:%s590]
                %602 = vst [vmem:[%s600] sm:%s590] %v601
                %v603 = vld [vmem:[%s599 + $0x8] sm:%s590]
                %604 = vst [vmem:[%s600 + $0x8] sm:%s590] %v603
                %s605 = sadd.s32 1, %s598
                %p606 = scmp.ge.s32.totalorder %s605, %s591
                %s607 = scalar_select %p606, 0, %s605
                %s608 = smul.u32 %s607, 16
                %s609 = smul.u32 %s607, 16
                %s610 = scalar_lea.vmem %s546, %s608 [#allocation10]
                %s611 = scalar_lea.vmem %s581, %s609
              $region85: #{policy_base_forward.1} parent=79 // loop_footer
                %s595 = sadd.s32 %s593, 1
              $region86: #{policy_base_forward.1} parent=79 // loop_footer_branch
                %592 = sbr.rel target = $region82
              $region87: #{policy_base_forward.1} parent=79 // loop_exit
                _
              %s612 = sshrl.u32 %s577, 1
              %s613 = sand.u32 %s577, 1
              %s614 = smul.u32 %s612, 2
              %s615 = smul.u32 8, %s614
              %s616 = scalar_lea.vmem %s546, %s615 [#allocation10]
              %s617 = smul.u32 8, %s614
              %s618 = scalar_lea.vmem %s581, %s617
              // While loop
              $region88: #{policy_base_forward.1} parent=79 // loop_pre_header
                _
              $region89: #{policy_base_forward.1} parent=79 // loop_header
                %s620 = sphi 0, %s622
                %p621 = scmp.ge.s32.totalorder %s620, %s613
                %s625 = sphi 0, %s632
                %s626 = sphi %s616, %s635
                %s627 = sphi %s618, %s636
              $region90: #{policy_base_forward.1} parent=79 // loop_header_branch
                %624 = sbr.rel (%p621) target = $region94
              $region91: #{policy_base_forward.1} parent=79 // loop_body
                %v628 = vld [vmem:[%s626] sm:%s590]
                %629 = vst [vmem:[%s627] sm:%s590] %v628
                %s630 = sadd.s32 1, %s625
                %p631 = scmp.ge.s32.totalorder %s630, %s613
                %s632 = scalar_select %p631, 0, %s630
                %s633 = smul.u32 %s632, 8
                %s634 = smul.u32 %s632, 8
                %s635 = scalar_lea.vmem %s616, %s633 [#allocation10]
                %s636 = scalar_lea.vmem %s618, %s634
              $region92: #{policy_base_forward.1} parent=79 // loop_footer
                %s622 = sadd.s32 %s620, 1
              $region93: #{policy_base_forward.1} parent=79 // loop_footer_branch
                %619 = sbr.rel target = $region89
              $region94: #{policy_base_forward.1} parent=79 // loop_exit
                _
            $region80: #{policy_base_forward.1} parent=71 // pred_fallthru
              _
          $region72: #{policy_base_forward.1} parent=67 // pred_fallthru
            _
          %687 = vnop
        $region68: #{policy_base_forward.1} parent=47 // pred_fallthru
          _
      $region48: #{policy_base_forward.1} parent=5 // pred_fallthru
        _
      %p688 = scmp.le.s32.totalorder 2, %s23
      // Predicated region
      $region117: #{policy_base_forward.1} parent=5 // pred_check
        %p689 = pneg %p688
      $region118: #{policy_base_forward.1} parent=5 // pred_check_branch
        %691 = sbr.rel (%p689) target = $region120
      $region119: #{policy_base_forward.1} parent=5 // pred_region
        %s692 = ssub.s32 %s23, 2
        // Predicated region
        $region121: #{policy_base_forward.1} parent=119 // pred_check
          %p693 = pneg %p204
        $region122: #{policy_base_forward.1} parent=119 // pred_check_branch
          %695 = sbr.rel (%p693) target = $region124
        $region123: #{policy_base_forward.1} parent=119 // pred_region
          %s696 = sand.u32 %s189, 1
          %s697 = scalar_lea.sflag [#allocation5], %s696
          %s698 = sand.u32 %s189, 1
          %s699 = smul.addr %s698, 16
          %s700 = scalar_lea.vmem [#allocation9], %s699
          %702 = dma.done %s697, 256
        $region124: #{policy_base_forward.1} parent=119 // pred_fallthru
          _
        // Predicated region
        $region125: #{policy_base_forward.1} parent=119 // pred_check
          %p703 = pneg %p230
        $region126: #{policy_base_forward.1} parent=119 // pred_check_branch
          %705 = sbr.rel (%p703) target = $region128
        $region127: #{policy_base_forward.1} parent=119 // pred_region
          %s706 = sand.u32 %s215, 1
          %s707 = sand.u32 %s215, 1
          %s708 = smul.addr %s707, 16
          %s709 = scalar_lea.vmem [#allocation10], %s708
        $region128: #{policy_base_forward.1} parent=119 // pred_fallthru
          _
      $region120: #{policy_base_forward.1} parent=5 // pred_fallthru
        _
    $region6: #{policy_base_forward.1} parent=1 // loop_footer
      %s27 = sadd.s32 1, %s23
    $region7: #{policy_base_forward.1} parent=1 // loop_footer_branch
      %22 = sbr.rel target = $region3
    $region8: #{policy_base_forward.1} parent=1 // loop_exit
      _
    %710 = vsyncpa [#allocation4], 1
    %s711 = scalar_lea.sflag [#allocation4], 1
    %712 = vsyncpa %s711, 1
    %713 = vsyncpa [#allocation7], 1
    %714 = vsyncpa [#allocation5], 1
    %s715 = scalar_lea.sflag [#allocation5], 1
    %716 = vsyncpa %s715, 1

</llo_original>
